<compile_context>
chip_gen: v5e
topology: v5e:2x2
jax: 0.10.0
libtpu: 0.0.40
codegen_flags: <defaults>
</compile_context>

<pallas_src>
import jax
import jax.numpy as jnp
from jax.experimental import pallas as pl
from jax.experimental.pallas import tpu as pltpu


# ----------------------------------------------------------------------------
# Kernel 1: graph projection (soft assignment q, channels-first) + vertex
# encoding statistics, finalized into the V-node graph-conv output zout^T.
# Grid: (B, N // n_tile); the N axis is a reduction carried in VMEM scratch.
# ----------------------------------------------------------------------------
def _gcu_project_kernel(x_ref, plhs_ref, bias_ref, w_ref, isig_ref, thetat_ref,
                        q_ref, zoutt_ref, qtx_acc, den_acc):
    nt = pl.program_id(1)

    @pl.when(nt == 0)
    def _init():
        qtx_acc[...] = jnp.zeros_like(qtx_acc)
        den_acc[...] = jnp.zeros_like(den_acc)

    x = x_ref[0].astype(jnp.float32)                                  # (C, n)

    # Fused graph projection: logits = [-1/(2 sig^2) | w/sig^2] @ [x*x ; x] + bias
    x2x = jnp.concatenate([x * x, x], axis=0)                         # (2C, n)
    logits = jnp.dot(plhs_ref[...], x2x,
                     preferred_element_type=jnp.float32)              # (V, n)
    logits = logits + bias_ref[...]                                   # (V, 1) bcast

    # stable softmax over the V vertices (sublane axis, V == 2)
    logits = logits - jnp.max(logits, axis=0, keepdims=True)
    e = jnp.exp(logits)
    q = e * pl.reciprocal(jnp.sum(e, axis=0, keepdims=True), approx=True)  # (V, n)
    q_ref[0] = q.astype(q_ref.dtype)

    # accumulate vertex-encoding statistics across the N tiles
    den_acc[...] += jnp.sum(q, axis=1, keepdims=True)                      # (V, 1)
    qtx_acc[...] += jax.lax.dot_general(
        q, x, (((1,), (1,)), ((), ())),
        preferred_element_type=jnp.float32)                                # (V, C)

    @pl.when(nt == pl.num_programs(1) - 1)
    def _finalize():
        v = w_ref.shape[0]
        den = den_acc[...]                                                 # (V, 1)
        z = (qtx_acc[...] - w_ref[...] * den)
        z = z * pl.reciprocal(den + 1e-6, approx=True) * isig_ref[...]     # (V, C)
        z = z * jax.lax.rsqrt(jnp.sum(z * z, axis=1, keepdims=True) + 1e-6)
        # V-node graph conv: zout = relu(A @ Z @ theta), A = Z Z^T (symmetric)
        a = jax.lax.dot_general(z, z, (((1,), (1,)), ((), ())),
                                preferred_element_type=jnp.float32)        # (V, V)
        ztt = jax.lax.dot_general(thetat_ref[...], z, (((1,), (1,)), ((), ())),
                                  preferred_element_type=jnp.float32)      # (F, V)
        zo = ztt[:, 0:1] * a[0:1, :]
        for k in range(1, v):   # V == 2: VPU broadcasts, no tiny-K MXU op
            zo = zo + ztt[:, k:k + 1] * a[k:k + 1, :]
        zoutt_ref[0] = jnp.maximum(zo, 0.0).astype(zoutt_ref.dtype)        # (F, V)


# ----------------------------------------------------------------------------
# Kernel 2: graph re-projection  y[f, n] = sum_k zout[k, f] * q[k, n].
# Grid: (B, N // n_tile), both axes parallel (feeds both TCs on v7x).
# ----------------------------------------------------------------------------
def _gcu_reproject_kernel(q_ref, zoutt_ref, y_ref):
    q = q_ref[0].astype(jnp.float32)                                  # (V, n)
    zt = zoutt_ref[0].astype(jnp.float32)                             # (F, V)
    v = q.shape[0]
    # sublane rows of q + VPU broadcasts; lane-dense (F, n) store.
    y = zt[:, 0:1] * q[0:1, :]
    for k in range(1, v):
        y = y + zt[:, k:k + 1] * q[k:k + 1, :]
    y_ref[0] = y.astype(y_ref.dtype)


def _pick_n_tile(n, cap=2048):
    """Largest multiple of 128 that divides n (capped); else the full n."""
    if n % 128 != 0:
        return n
    t = min(n, cap)
    t -= t % 128
    while n % t != 0:
        t -= 128
    return t


def gcu_pallas(x_flat, w, sig, theta, *, n_tile=None,
               vmem_limit=48 * 1024 * 1024):
    """GCU in channels-first layout: x_flat (B, C, N) -> y (B, F, N)."""
    B, C, N = x_flat.shape
    V = w.shape[0]
    F = theta.shape[1]
    if n_tile is None:
        n_tile = _pick_n_tile(N)
    n_steps = N // n_tile

    # Hoisted, grid-invariant parameter math (computed once, in f32).
    w32 = w.astype(jnp.float32)
    sig32 = sig.astype(jnp.float32)
    inv_var = 1.0 / (sig32 * sig32)                                       # (V, C)
    proj_lhs = jnp.concatenate([-0.5 * inv_var, w32 * inv_var], axis=1)   # (V, 2C)
    bias = -0.5 * jnp.sum(w32 * w32 * inv_var, axis=1, keepdims=True)     # (V, 1)
    inv_sig = 1.0 / sig32                                                 # (V, C)
    theta_t = theta.astype(jnp.float32).T                                 # (F, C)

    itemsize = jnp.dtype(x_flat.dtype).itemsize
    cost1 = pl.CostEstimate(
        flops=int(B * N * (6 * C * V + 12 * V)),
        transcendentals=int(B * N * (V + 1)),
        bytes_accessed=int(B * N * C * itemsize + B * V * N * 4 + B * F * V * 4))

    q, zout_t = pl.pallas_call(
        _gcu_project_kernel,
        out_shape=(jax.ShapeDtypeStruct((B, V, N), jnp.float32),
                   jax.ShapeDtypeStruct((B, F, V), jnp.float32)),
        grid=(B, n_steps),
        in_specs=[
            pl.BlockSpec((1, C, n_tile), lambda b, t: (b, 0, t)),   # x
            pl.BlockSpec((V, 2 * C), lambda b, t: (0, 0)),          # fused proj LHS
            pl.BlockSpec((V, 1), lambda b, t: (0, 0)),              # bias (-0.5*c3)
            pl.BlockSpec((V, C), lambda b, t: (0, 0)),              # w
            pl.BlockSpec((V, C), lambda b, t: (0, 0)),              # 1/sig
            pl.BlockSpec((F, C), lambda b, t: (0, 0)),              # theta^T
        ],
        out_specs=(pl.BlockSpec((1, V, n_tile), lambda b, t: (b, 0, t)),
                   pl.BlockSpec((1, F, V), lambda b, t: (b, 0, 0))),
        scratch_shapes=[pltpu.VMEM((V, C), jnp.float32),            # sum_n q*(x)
                        pltpu.VMEM((V, 1), jnp.float32)],           # sum_n q
        compiler_params=pltpu.CompilerParams(
            dimension_semantics=("parallel", "arbitrary"),
            vmem_limit_bytes=vmem_limit),
        cost_estimate=cost1,
    )(x_flat, proj_lhs, bias, w32, inv_sig, theta_t)

    cost2 = pl.CostEstimate(
        flops=int(B * N * 2 * V * F),
        transcendentals=0,
        bytes_accessed=int(B * V * N * 4 + B * F * V * 4 + B * F * N * itemsize))

    y = pl.pallas_call(
        _gcu_reproject_kernel,
        out_shape=jax.ShapeDtypeStruct((B, F, N), x_flat.dtype),
        grid=(B, n_steps),
        in_specs=[pl.BlockSpec((1, V, n_tile), lambda b, t: (b, 0, t)),
                  pl.BlockSpec((1, F, V), lambda b, t: (b, 0, 0))],
        out_specs=pl.BlockSpec((1, F, n_tile), lambda b, t: (b, 0, t)),
        compiler_params=pltpu.CompilerParams(
            dimension_semantics=("parallel", "parallel"),
            vmem_limit_bytes=vmem_limit),
        cost_estimate=cost2,
    )(q, zout_t)
    return y


def graph_conv_forward(x_nchw, params):
    """GraphConv.forward: y = GCU(x); out = torch.cat((x, y), dim=1)."""
    w, sig, theta = params
    B, C, H, W = x_nchw.shape
    F = theta.shape[1]
    x_flat = x_nchw.reshape(B, C, H * W)          # free reshape, no transpose
    y_flat = gcu_pallas(x_flat, w, sig, theta)    # (B, F, N), dtype == x.dtype
    y_nchw = y_flat.reshape(B, F, H, W)
    return jnp.concatenate([x_nchw, y_nchw], axis=1)


def graph_conv_reference(x_nchw, params):
    """Pure-JAX reference of the same math (for correctness check)."""
    w, sig, theta = params
    B, C, H, Wd = x_nchw.shape
    F = theta.shape[1]
    x = jnp.transpose(x_nchw, (0, 2, 3, 1)).reshape(B, H * Wd, C)
    diff = (x[:, :, None, :] - w[None, None, :, :]) / sig               # (B,N,V,C)
    dist = jnp.sum(diff * diff, axis=-1)                                # (B,N,V)
    q = jax.nn.softmax(-0.5 * dist, axis=-1)                            # (B,N,V)
    denom = jnp.sum(q, axis=1)[:, :, None]                              # (B,V,1)
    z = jnp.einsum('bnv,bnvc->bvc', q, diff) / (denom + 1e-6)
    z = z / jnp.sqrt(jnp.sum(z * z, axis=-1, keepdims=True) + 1e-6)
    a = jnp.einsum('bvc,buc->bvu', z, z)
    zt = jnp.einsum('bvc,cf->bvf', z, theta)
    zout = jax.nn.relu(jnp.einsum('bvu,buf->bvf', a, zt))
    y = jnp.einsum('bnv,bvf->bnf', q, zout)
    y_nchw = jnp.transpose(y.reshape(B, H, Wd, F), (0, 3, 1, 2))
    return jnp.concatenate([x_nchw, y_nchw], axis=1)


if __name__ == "__main__":
    key = jax.random.PRNGKey(0)
    kx, kw, ks, kt = jax.random.split(key, 4)

    B, C, H, W = 2, 32, 16, 16   # NCHW input, as the PyTorch module expects
    V = 2                        # GraphConv builds GCU(V=2, batch=batch)
    F = 16                       # GCU output features (demo-sized; repo default 256)

    x = jax.random.normal(kx, (B, C, H, W), jnp.float32)
    # deterministic parameter init (synthetic, not loaded from a checkpoint)
    w_anchor = jax.random.normal(kw, (V, C), jnp.float32)
    sigma = 0.8 + 0.4 * jax.random.uniform(ks, (V, C), jnp.float32)
    theta = jax.random.normal(kt, (C, F), jnp.float32) / jnp.sqrt(float(C))
    params = (w_anchor, sigma, theta)

    out = jax.block_until_ready(graph_conv_forward(x, params))
    assert out.shape == (B, C + F, H, W), out.shape

    ref = graph_conv_reference(x, params)
    max_err = float(jnp.max(jnp.abs(out - ref)))
    assert jnp.allclose(out, ref, atol=2e-3, rtol=2e-3), max_err

    print("KERNEL_OK")
</pallas_src>

<mosaic_0001>
module attributes {stable_mosaic.version = 11 : i64} {
  func.func @_gcu_project_kernel(%arg0: i32, %arg1: i32, %arg2: memref<1x32x256xf32, #tpu.memory_space<vmem>>, %arg3: memref<2x64xf32, #tpu.memory_space<vmem>>, %arg4: memref<2x1xf32, #tpu.memory_space<vmem>>, %arg5: memref<2x32xf32, #tpu.memory_space<vmem>>, %arg6: memref<2x32xf32, #tpu.memory_space<vmem>>, %arg7: memref<16x32xf32, #tpu.memory_space<vmem>>, %arg8: memref<1x2x256xf32, #tpu.memory_space<vmem>>, %arg9: memref<1x16x2xf32, #tpu.memory_space<vmem>>, %arg10: memref<2x32xf32, #tpu.memory_space<vmem>>, %arg11: memref<2x1xf32, #tpu.memory_space<vmem>>) attributes {dimension_semantics = [#tpu.dimension_semantics<parallel>, #tpu.dimension_semantics<arbitrary>], iteration_bounds = array<i64: 2, 1>, scalar_prefetch = 0 : i64, scratch_operands = 2 : i64, tpu.core_type = #tpu.core_type<tc>, window_params = [{transform_indices = @transform_0, window_bounds = array<i64: 1, 32, 256>}, {pipeline_mode = #tpu.pipeline_mode<synchronous>, transform_indices = @transform_1, window_bounds = array<i64: 2, 64>}, {pipeline_mode = #tpu.pipeline_mode<synchronous>, transform_indices = @transform_2, window_bounds = array<i64: 2, 1>}, {pipeline_mode = #tpu.pipeline_mode<synchronous>, transform_indices = @transform_3, window_bounds = array<i64: 2, 32>}, {pipeline_mode = #tpu.pipeline_mode<synchronous>, transform_indices = @transform_4, window_bounds = array<i64: 2, 32>}, {pipeline_mode = #tpu.pipeline_mode<synchronous>, transform_indices = @transform_5, window_bounds = array<i64: 16, 32>}, {transform_indices = @transform_6, window_bounds = array<i64: 1, 2, 256>}, {transform_indices = @transform_7, window_bounds = array<i64: 1, 16, 2>}]} {
    %c0_i32 = arith.constant 0 : i32
    %0 = arith.cmpi eq, %arg1, %c0_i32 : i32
    %1 = arith.extui %0 : i1 to i32
    %c0_i32_0 = arith.constant 0 : i32
    %2 = arith.cmpi ne, %1, %c0_i32_0 : i32
    scf.if %2 {
      %cst_24 = arith.constant 0.000000e+00 : f32
      %37 = vector.broadcast %cst_24 : f32 to vector<2x32xf32>
      %c0_25 = arith.constant 0 : index
      %c0_26 = arith.constant 0 : index
      %38 = vector.load %arg10[%c0_25, %c0_26] : memref<2x32xf32, #tpu.memory_space<vmem>>, vector<2x32xf32>
      tpu.vector_store %arg10[%c0_25, %c0_26], %37 {strides = array<i32>} : memref<2x32xf32, #tpu.memory_space<vmem>>, vector<2x32xf32>,
      %cst_27 = arith.constant 0.000000e+00 : f32
      %39 = vector.broadcast %cst_27 : f32 to vector<2x1xf32>
      %c0_28 = arith.constant 0 : index
      %c0_29 = arith.constant 0 : index
      %40 = vector.load %arg11[%c0_28, %c0_29] : memref<2x1xf32, #tpu.memory_space<vmem>>, vector<2x1xf32>
      tpu.vector_store %arg11[%c0_28, %c0_29], %39 {strides = array<i32>} : memref<2x1xf32, #tpu.memory_space<vmem>>, vector<2x1xf32>,
    } else {
    }
    %c0 = arith.constant 0 : index
    %c0_1 = arith.constant 0 : index
    %c0_2 = arith.constant 0 : index
    %3 = vector.load %arg2[%c0, %c0_1, %c0_2] : memref<1x32x256xf32, #tpu.memory_space<vmem>>, vector<1x32x256xf32>
    %4 = vector.shape_cast %3 : vector<1x32x256xf32> to vector<32x256xf32>
    %5 = arith.mulf %4, %4 : vector<32x256xf32>
    %6 = tpu.concatenate %5, %4 in 0 : vector<32x256xf32>, vector<32x256xf32> -> vector<64x256xf32>
    %c0_3 = arith.constant 0 : index
    %c0_4 = arith.constant 0 : index
    %7 = vector.load %arg3[%c0_3, %c0_4] : memref<2x64xf32, #tpu.memory_space<vmem>>, vector<2x64xf32>
    %cst = arith.constant dense<0.000000e+00> : vector<2x256xf32>
    %8 = tpu.matmul %7, %6, %cst {dimension_numbers = #tpu.dot_dimension_numbers<[1], [0], [0], [1], [0, 0, 1, 1], [], []>} : vector<2x64xf32>, vector<64x256xf32>, vector<2x256xf32> -> vector<2x256xf32>
    %c0_5 = arith.constant 0 : index
    %c0_6 = arith.constant 0 : index
    %9 = vector.load %arg4[%c0_5, %c0_6] : memref<2x1xf32, #tpu.memory_space<vmem>>, vector<2x1xf32>
    %10 = vector.broadcast %9 : vector<2x1xf32> to vector<2x256xf32>
    %11 = arith.addf %8, %10 : vector<2x256xf32>
    %cst_7 = arith.constant dense<0xFF800000> : vector<256xf32>
    %12 = vector.multi_reduction <maximumf>, %11, %cst_7 [0] : vector<2x256xf32> to vector<256xf32>
    %13 = vector.shape_cast %12 : vector<256xf32> to vector<1x256xf32>
    %14 = vector.broadcast %13 : vector<1x256xf32> to vector<2x256xf32>
    %15 = arith.subf %11, %14 : vector<2x256xf32>
    %16 = math.exp %15 : vector<2x256xf32>
    %cst_8 = arith.constant dense<0.000000e+00> : vector<256xf32>
    %17 = vector.multi_reduction <add>, %16, %cst_8 [0] : vector<2x256xf32> to vector<256xf32>
    %18 = vector.shape_cast %17 : vector<256xf32> to vector<1x256xf32>
    %19 = tpu.reciprocal %18 {approx = true} : vector<1x256xf32> -> vector<1x256xf32>
    %20 = vector.broadcast %19 : vector<1x256xf32> to vector<2x256xf32>
    %21 = arith.mulf %16, %20 : vector<2x256xf32>
    %c0_9 = arith.constant 0 : index
    %c0_10 = arith.constant 0 : index
    %c0_11 = arith.constant 0 : index
    %22 = vector.load %arg8[%c0_9, %c0_10, %c0_11] : memref<1x2x256xf32, #tpu.memory_space<vmem>>, vector<1x2x256xf32>
    %23 = vector.shape_cast %22 : vector<1x2x256xf32> to vector<2x256xf32>
    %24 = vector.shape_cast %21 : vector<2x256xf32> to vector<1x2x256xf32>
    tpu.vector_store %arg8[%c0_9, %c0_10, %c0_11], %24 {strides = array<i32>} : memref<1x2x256xf32, #tpu.memory_space<vmem>>, vector<1x2x256xf32>,
    %c0_12 = arith.constant 0 : index
    %c0_13 = arith.constant 0 : index
    %25 = vector.load %arg11[%c0_12, %c0_13] : memref<2x1xf32, #tpu.memory_space<vmem>>, vector<2x1xf32>
    %cst_14 = arith.constant dense<0.000000e+00> : vector<2xf32>
    %26 = vector.multi_reduction <add>, %21, %cst_14 [1] : vector<2x256xf32> to vector<2xf32>
    %27 = vector.shape_cast %26 : vector<2xf32> to vector<2x1xf32>
    %28 = arith.addf %25, %27 : vector<2x1xf32>
    %c0_15 = arith.constant 0 : index
    %c0_16 = arith.constant 0 : index
    %29 = vector.load %arg11[%c0_15, %c0_16] : memref<2x1xf32, #tpu.memory_space<vmem>>, vector<2x1xf32>
    tpu.vector_store %arg11[%c0_15, %c0_16], %28 {strides = array<i32>} : memref<2x1xf32, #tpu.memory_space<vmem>>, vector<2x1xf32>,
    %c0_17 = arith.constant 0 : index
    %c0_18 = arith.constant 0 : index
    %30 = vector.load %arg10[%c0_17, %c0_18] : memref<2x32xf32, #tpu.memory_space<vmem>>, vector<2x32xf32>
    %cst_19 = arith.constant dense<0.000000e+00> : vector<2x32xf32>
    %31 = tpu.matmul %21, %4, %cst_19 {dimension_numbers = #tpu.dot_dimension_numbers<[1], [1], [0], [0], [0, 0, 1, 0], [], []>} : vector<2x256xf32>, vector<32x256xf32>, vector<2x32xf32> -> vector<2x32xf32>
    %32 = arith.addf %30, %31 : vector<2x32xf32>
    %c0_20 = arith.constant 0 : index
    %c0_21 = arith.constant 0 : index
    %33 = vector.load %arg10[%c0_20, %c0_21] : memref<2x32xf32, #tpu.memory_space<vmem>>, vector<2x32xf32>
    tpu.vector_store %arg10[%c0_20, %c0_21], %32 {strides = array<i32>} : memref<2x32xf32, #tpu.memory_space<vmem>>, vector<2x32xf32>,
    %c0_i32_22 = arith.constant 0 : i32
    %34 = arith.cmpi eq, %arg1, %c0_i32_22 : i32
    %35 = arith.extui %34 : i1 to i32
    %c0_i32_23 = arith.constant 0 : i32
    %36 = arith.cmpi ne, %35, %c0_i32_23 : i32
    scf.if %36 {
      %c0_24 = arith.constant 0 : index
      %c0_25 = arith.constant 0 : index
      %37 = vector.load %arg11[%c0_24, %c0_25] : memref<2x1xf32, #tpu.memory_space<vmem>>, vector<2x1xf32>
      %c0_26 = arith.constant 0 : index
      %c0_27 = arith.constant 0 : index
      %38 = vector.load %arg10[%c0_26, %c0_27] : memref<2x32xf32, #tpu.memory_space<vmem>>, vector<2x32xf32>
      %c0_28 = arith.constant 0 : index
      %c0_29 = arith.constant 0 : index
      %39 = vector.load %arg5[%c0_28, %c0_29] : memref<2x32xf32, #tpu.memory_space<vmem>>, vector<2x32xf32>
      %40 = vector.broadcast %37 : vector<2x1xf32> to vector<2x32xf32>
      %41 = arith.mulf %39, %40 : vector<2x32xf32>
      %42 = arith.subf %38, %41 : vector<2x32xf32>
      %cst_30 = arith.constant 9.99999997E-7 : f32
      %43 = vector.broadcast %cst_30 : f32 to vector<2x1xf32>
      %44 = arith.addf %37, %43 : vector<2x1xf32>
      %45 = tpu.reciprocal %44 {approx = true} : vector<2x1xf32> -> vector<2x1xf32>
      %46 = vector.broadcast %45 : vector<2x1xf32> to vector<2x32xf32>
      %47 = arith.mulf %42, %46 : vector<2x32xf32>
      %c0_31 = arith.constant 0 : index
      %c0_32 = arith.constant 0 : index
      %48 = vector.load %arg6[%c0_31, %c0_32] : memref<2x32xf32, #tpu.memory_space<vmem>>, vector<2x32xf32>
      %49 = arith.mulf %47, %48 : vector<2x32xf32>
      %50 = arith.mulf %49, %49 : vector<2x32xf32>
      %cst_33 = arith.constant dense<0.000000e+00> : vector<2xf32>
      %51 = vector.multi_reduction <add>, %50, %cst_33 [1] : vector<2x32xf32> to vector<2xf32>
      %52 = vector.shape_cast %51 : vector<2xf32> to vector<2x1xf32>
      %cst_34 = arith.constant 9.99999997E-7 : f32
      %53 = vector.broadcast %cst_34 : f32 to vector<2x1xf32>
      %54 = arith.addf %52, %53 : vector<2x1xf32>
      %55 = math.rsqrt %54 : vector<2x1xf32>
      %56 = vector.broadcast %55 : vector<2x1xf32> to vector<2x32xf32>
      %57 = arith.mulf %49, %56 : vector<2x32xf32>
      %cst_35 = arith.constant dense<0.000000e+00> : vector<2x2xf32>
      %58 = tpu.matmul %57, %57, %cst_35 {dimension_numbers = #tpu.dot_dimension_numbers<[1], [1], [0], [0], [0, 0, 1, 0], [], []>} : vector<2x32xf32>, vector<2x32xf32>, vector<2x2xf32> -> vector<2x2xf32>
      %c0_36 = arith.constant 0 : index
      %c0_37 = arith.constant 0 : index
      %59 = vector.load %arg7[%c0_36, %c0_37] : memref<16x32xf32, #tpu.memory_space<vmem>>, vector<16x32xf32>
      %cst_38 = arith.constant dense<0.000000e+00> : vector<16x2xf32>
      %60 = tpu.matmul %59, %57, %cst_38 {dimension_numbers = #tpu.dot_dimension_numbers<[1], [1], [0], [0], [0, 0, 1, 0], [], []>} : vector<16x32xf32>, vector<2x32xf32>, vector<16x2xf32> -> vector<16x2xf32>
      %61 = vector.extract_strided_slice %60 {offsets = [0, 0], sizes = [16, 1], strides = [1, 1]} : vector<16x2xf32> to vector<16x1xf32>
      %62 = vector.extract_strided_slice %58 {offsets = [0, 0], sizes = [1, 2], strides = [1, 1]} : vector<2x2xf32> to vector<1x2xf32>
      %63 = vector.broadcast %61 : vector<16x1xf32> to vector<16x2xf32>
      %64 = vector.broadcast %62 : vector<1x2xf32> to vector<16x2xf32>
      %65 = arith.mulf %63, %64 : vector<16x2xf32>
      %66 = vector.extract_strided_slice %60 {offsets = [0, 1], sizes = [16, 1], strides = [1, 1]} : vector<16x2xf32> to vector<16x1xf32>
      %67 = vector.extract_strided_slice %58 {offsets = [1, 0], sizes = [1, 2], strides = [1, 1]} : vector<2x2xf32> to vector<1x2xf32>
      %68 = vector.broadcast %66 : vector<16x1xf32> to vector<16x2xf32>
      %69 = vector.broadcast %67 : vector<1x2xf32> to vector<16x2xf32>
      %70 = arith.mulf %68, %69 : vector<16x2xf32>
      %71 = arith.addf %65, %70 : vector<16x2xf32>
      %cst_39 = arith.constant 0.000000e+00 : f32
      %72 = vector.broadcast %cst_39 : f32 to vector<16x2xf32>
      %73 = arith.maximumf %71, %72 : vector<16x2xf32>
      %c0_40 = arith.constant 0 : index
      %c0_41 = arith.constant 0 : index
      %c0_42 = arith.constant 0 : index
      %74 = vector.load %arg9[%c0_40, %c0_41, %c0_42] : memref<1x16x2xf32, #tpu.memory_space<vmem>>, vector<1x16x2xf32>
      %75 = vector.shape_cast %74 : vector<1x16x2xf32> to vector<16x2xf32>
      %76 = vector.shape_cast %73 : vector<16x2xf32> to vector<1x16x2xf32>
      tpu.vector_store %arg9[%c0_40, %c0_41, %c0_42], %76 {strides = array<i32>} : memref<1x16x2xf32, #tpu.memory_space<vmem>>, vector<1x16x2xf32>,
    } else {
    }
    return
  }
  func.func @transform_0(%arg0: i32, %arg1: i32) -> (i32, i32, i32) {
    %c0_i32 = arith.constant 0 : i32
    %c0_i32_0 = arith.constant 0 : i32
    return %arg0, %c0_i32, %arg1 : i32, i32, i32
  }
  func.func @transform_1(%arg0: i32, %arg1: i32) -> (i32, i32) {
    %c0_i32 = arith.constant 0 : i32
    %c0_i32_0 = arith.constant 0 : i32
    %c0_i32_1 = arith.constant 0 : i32
    return %c0_i32, %c0_i32_0 : i32, i32
  }
  func.func @transform_2(%arg0: i32, %arg1: i32) -> (i32, i32) {
    %c0_i32 = arith.constant 0 : i32
    %c0_i32_0 = arith.constant 0 : i32
    %c0_i32_1 = arith.constant 0 : i32
    return %c0_i32, %c0_i32_0 : i32, i32
  }
  func.func @transform_3(%arg0: i32, %arg1: i32) -> (i32, i32) {
    %c0_i32 = arith.constant 0 : i32
    %c0_i32_0 = arith.constant 0 : i32
    %c0_i32_1 = arith.constant 0 : i32
    return %c0_i32, %c0_i32_0 : i32, i32
  }
  func.func @transform_4(%arg0: i32, %arg1: i32) -> (i32, i32) {
    %c0_i32 = arith.constant 0 : i32
    %c0_i32_0 = arith.constant 0 : i32
    %c0_i32_1 = arith.constant 0 : i32
    return %c0_i32, %c0_i32_0 : i32, i32
  }
  func.func @transform_5(%arg0: i32, %arg1: i32) -> (i32, i32) {
    %c0_i32 = arith.constant 0 : i32
    %c0_i32_0 = arith.constant 0 : i32
    %c0_i32_1 = arith.constant 0 : i32
    return %c0_i32, %c0_i32_0 : i32, i32
  }
  func.func @transform_6(%arg0: i32, %arg1: i32) -> (i32, i32, i32) {
    %c0_i32 = arith.constant 0 : i32
    %c0_i32_0 = arith.constant 0 : i32
    return %arg0, %c0_i32, %arg1 : i32, i32, i32
  }
  func.func @transform_7(%arg0: i32, %arg1: i32) -> (i32, i32, i32) {
    %c0_i32 = arith.constant 0 : i32
    %c0_i32_0 = arith.constant 0 : i32
    %c0_i32_1 = arith.constant 0 : i32
    return %arg0, %c0_i32, %c0_i32_0 : i32, i32, i32
  }
}

</mosaic_0001>

<llo_original>
// kernel: tpu_custom_call.1
$region0: #{tpu_custom_call.1}
  #allocation0 [shape = 'u32[]', space=smem, size = 0x4, offset = 0x4, fixed_abs, tag = 'smem constant byte address 0x4 - core index']
  #allocation1 [shape = 'u32[72,128]{1,0:T(1,128)}', space=vmem, size = 0x9000, scoped, tag = 'internal scratch']
  #allocation2 [shape = 'f32[2,32]{1,0:T(2,128)}', space=vmem, size = 0x400, scoped, tag = 'scratch operand']
  #allocation3 [shape = 'f32[2,1]{1,0:T(2,128)}', space=vmem, size = 0x400, scoped, tag = 'scratch operand']
  %s0 = inlined_call_operand.hbm [shape: f32[2,32,256], index: 0, kind: input, shape index: {}]
  %s1 = inlined_call_operand.vmem [shape: f32[2,64], index: 1, kind: input, shape index: {}]
  %s2 = inlined_call_operand.vmem [shape: f32[2,1], index: 2, kind: input, shape index: {}]
  %s3 = inlined_call_operand.vmem [shape: f32[2,32], index: 3, kind: input, shape index: {}]
  %s4 = inlined_call_operand.vmem [shape: f32[2,32], index: 4, kind: input, shape index: {}]
  %s5 = inlined_call_operand.hbm [shape: f32[16,32], index: 5, kind: input, shape index: {}]
  %s6 = inlined_call_operand.hbm [shape: f32[2,2,256], index: 6, kind: output, shape index: {0}]
  %s7 = inlined_call_operand.vmem [shape: f32[2,16,2], index: 7, kind: output, shape index: {1}]
  %8 = xla_tuple %s6, %s7
  %s9 = sld [smem:[#allocation0]]
  $region81: #{tpu_custom_call.1} parent=0
    _
  %s11 = ssub.s32 1, %s9
  %s12 = scalar_select 0, %s11, %s9
  $region1: #{tpu_custom_call.1} parent=0
    #allocation4 [shape = 'u8[65536]{0}', space=vmem, size = 0x10000, scoped, tag = 'input window, operand 0']
    #allocation5 [shape = 's32[2]{0}', space=sflag, size = 0x8, scoped, tag = 'scoped memory for tpu_custom_call.1']
    #allocation6 [shape = 's32[2]{0}', space=sflag, size = 0x8, scoped, tag = 'scoped memory for tpu_custom_call.1']
    #allocation7 [shape = 'u8[8192]{0}', space=vmem, size = 0x2000, scoped, tag = 'input window, operand 5, single buffered']
    #allocation8 [shape = 's32[1]{0}', space=sflag, size = 0x4, scoped, tag = 'scoped memory for tpu_custom_call.1']
    #allocation9 [shape = 'u8[4096]{0}', space=vmem, size = 0x1000, scoped, tag = 'output window, operand 0']
    %13 = vsyncpa [#allocation5], 0
    %s14 = scalar_lea.sflag [#allocation5], 1
    %15 = vsyncpa %s14, 0
    %16 = vsyncpa [#allocation8], 0
    %17 = vsyncpa [#allocation6], 0
    %s18 = scalar_lea.sflag [#allocation6], 1
    %19 = vsyncpa %s18, 0
    loop: start=0, step=1, limit=4
    $region2: #{tpu_custom_call.1} parent=1 // loop_pre_header
      _
    $region3: #{tpu_custom_call.1} parent=1 // loop_header
      %s21 = sphi 0, %s25
      %p22 = scmp.ge.s32.totalorder %s21, 4
      %s28 = sphi 0, %s40
      %s29 = sphi 0, %s36
      %s30 = sphi 0, %s28
      %s31 = sphi 0, %s29
      %s32 = sphi 0, %s30
      %s33 = sphi 0, %s31
      %s45 = sphi 0, %s47
      %s48 = sphi 0, %s45
      %s49 = sphi 0, %s48
      %s65 = sphi 0, %s49
      %s69 = sphi 0, %s69
      %s71 = sphi 0, %s69
      %s72 = sphi 0, %s71
      %s86 = sphi 0, %s72
      %s90 = sphi 0, %s90
      %s92 = sphi 0, %s90
      %s93 = sphi 0, %s92
      %s107 = sphi 0, %s93
      %s111 = sphi 0, %s111
      %s113 = sphi 0, %s111
      %s114 = sphi 0, %s113
      %s128 = sphi 0, %s114
      %s132 = sphi 0, %s132
      %s134 = sphi 0, %s132
      %s135 = sphi 0, %s134
      %s149 = sphi 0, %s135
      %s153 = sphi 0, %s153
      %s155 = sphi 0, %s153
      %s156 = sphi 0, %s155
      %s170 = sphi 0, %s156
      %s178 = sphi 0, %s180
      %s181 = sphi 0, %s178
      %s182 = sphi 0, %s181
      %s198 = sphi 0, %s182
      %s204 = sphi 0, %s206
      %s207 = sphi 0, %s204
      %s208 = sphi 0, %s207
      %s224 = sphi 0, %s208
    $region4: #{tpu_custom_call.1} parent=1 // loop_header_branch
      %24 = sbr.rel (%p22) target = $region8
    $region5: #{tpu_custom_call.1} parent=1 // loop_body
      %s26 = ssub.s32 %s21, 1
      %s27 = ssub.s32 %s21, 2
      %s34 = sadd.s32 1, %s29
      %p35 = scmp.ge.s32.totalorder %s34, 1
      %s36 = scalar_select %p35, 0, %s34
      %s37 = sadd.s32 1, %s28
      %s38 = scalar_select %p35, %s37, %s28
      %p39 = scmp.ge.s32.totalorder %s38, 2
      %s40 = scalar_select %p39, 0, %s38
      %s41 = ssub.s32 %s28, %s40
      %s42 = ssub.s32 %s29, %s36
      %s43 = sor.u32 %s41, %s42
      %p44 = scmp.eq.s32.totalorder %s43, 0
      %s46 = sadd.s32 %s45, 1
      %s47 = scalar_select %p44, %s45, %s46
      %p50 = pneg %p44
      %p51 = scmp.eq.s32.totalorder %s21, 1
      %p52 = por %p50, %p51
      %p53 = scmp.ne.s32.totalorder %s45, %s48
      %p54 = scmp.eq.s32.totalorder %s21, 0
      %p55 = por %p53, %p54
      %p56 = scmp.ne.s32.totalorder %s45, %s48
      %p57 = scmp.eq.s32.totalorder %s26, 1
      %p58 = por %p56, %p57
      %p59 = scmp.ne.s32.totalorder %s48, %s49
      %p60 = scmp.eq.s32.totalorder %s26, 0
      %p61 = por %p59, %p60
      %p62 = scmp.ne.s32.totalorder %s48, %s49
      %p63 = scmp.eq.s32.totalorder %s27, 1
      %p64 = por %p62, %p63
      %p66 = scmp.ne.s32.totalorder %s49, %s65
      %p67 = scmp.eq.s32.totalorder %s27, 0
      %p68 = por %p66, %p67
      %s70 = sadd.s32 %s69, 1
      %p73 = scmp.eq.s32.totalorder %s21, 1
      %p74 = scmp.ne.s32.totalorder %s69, %s71
      %p75 = scmp.eq.s32.totalorder %s21, 0
      %p76 = por %p74, %p75
      %p77 = scmp.ne.s32.totalorder %s69, %s71
      %p78 = scmp.eq.s32.totalorder %s26, 1
      %p79 = por %p77, %p78
      %p80 = scmp.ne.s32.totalorder %s71, %s72
      %p81 = scmp.eq.s32.totalorder %s26, 0
      %p82 = por %p80, %p81
      %p83 = scmp.ne.s32.totalorder %s71, %s72
      %p84 = scmp.eq.s32.totalorder %s27, 1
      %p85 = por %p83, %p84
      %p87 = scmp.ne.s32.totalorder %s72, %s86
      %p88 = scmp.eq.s32.totalorder %s27, 0
      %p89 = por %p87, %p88
      %s91 = sadd.s32 %s90, 1
      %p94 = scmp.eq.s32.totalorder %s21, 1
      %p95 = scmp.ne.s32.totalorder %s90, %s92
      %p96 = scmp.eq.s32.totalorder %s21, 0
      %p97 = por %p95, %p96
      %p98 = scmp.ne.s32.totalorder %s90, %s92
      %p99 = scmp.eq.s32.totalorder %s26, 1
      %p100 = por %p98, %p99
      %p101 = scmp.ne.s32.totalorder %s92, %s93
      %p102 = scmp.eq.s32.totalorder %s26, 0
      %p103 = por %p101, %p102
      %p104 = scmp.ne.s32.totalorder %s92, %s93
      %p105 = scmp.eq.s32.totalorder %s27, 1
      %p106 = por %p104, %p105
      %p108 = scmp.ne.s32.totalorder %s93, %s107
      %p109 = scmp.eq.s32.totalorder %s27, 0
      %p110 = por %p108, %p109
      %s112 = sadd.s32 %s111, 1
      %p115 = scmp.eq.s32.totalorder %s21, 1
      %p116 = scmp.ne.s32.totalorder %s111, %s113
      %p117 = scmp.eq.s32.totalorder %s21, 0
      %p118 = por %p116, %p117
      %p119 = scmp.ne.s32.totalorder %s111, %s113
      %p120 = scmp.eq.s32.totalorder %s26, 1
      %p121 = por %p119, %p120
      %p122 = scmp.ne.s32.totalorder %s113, %s114
      %p123 = scmp.eq.s32.totalorder %s26, 0
      %p124 = por %p122, %p123
      %p125 = scmp.ne.s32.totalorder %s113, %s114
      %p126 = scmp.eq.s32.totalorder %s27, 1
      %p127 = por %p125, %p126
      %p129 = scmp.ne.s32.totalorder %s114, %s128
      %p130 = scmp.eq.s32.totalorder %s27, 0
      %p131 = por %p129, %p130
      %s133 = sadd.s32 %s132, 1
      %p136 = scmp.eq.s32.totalorder %s21, 1
      %p137 = scmp.ne.s32.totalorder %s132, %s134
      %p138 = scmp.eq.s32.totalorder %s21, 0
      %p139 = por %p137, %p138
      %p140 = scmp.ne.s32.totalorder %s132, %s134
      %p141 = scmp.eq.s32.totalorder %s26, 1
      %p142 = por %p140, %p141
      %p143 = scmp.ne.s32.totalorder %s134, %s135
      %p144 = scmp.eq.s32.totalorder %s26, 0
      %p145 = por %p143, %p144
      %p146 = scmp.ne.s32.totalorder %s134, %s135
      %p147 = scmp.eq.s32.totalorder %s27, 1
      %p148 = por %p146, %p147
      %p150 = scmp.ne.s32.totalorder %s135, %s149
      %p151 = scmp.eq.s32.totalorder %s27, 0
      %p152 = por %p150, %p151
      %s154 = sadd.s32 %s153, 1
      %p157 = scmp.eq.s32.totalorder %s21, 1
      %p158 = scmp.ne.s32.totalorder %s153, %s155
      %p159 = scmp.eq.s32.totalorder %s21, 0
      %p160 = por %p158, %p159
      %p161 = scmp.ne.s32.totalorder %s153, %s155
      %p162 = scmp.eq.s32.totalorder %s26, 1
      %p163 = por %p161, %p162
      %p164 = scmp.ne.s32.totalorder %s155, %s156
      %p165 = scmp.eq.s32.totalorder %s26, 0
      %p166 = por %p164, %p165
      %p167 = scmp.ne.s32.totalorder %s155, %s156
      %p168 = scmp.eq.s32.totalorder %s27, 1
      %p169 = por %p167, %p168
      %p171 = scmp.ne.s32.totalorder %s156, %s170
      %p172 = scmp.eq.s32.totalorder %s27, 0
      %p173 = por %p171, %p172
      %s174 = ssub.s32 %s28, %s40
      %s175 = ssub.s32 %s29, %s36
      %s176 = sor.u32 %s174, %s175
      %p177 = scmp.eq.s32.totalorder %s176, 0
      %s179 = sadd.s32 %s178, 1
      %s180 = scalar_select %p177, %s178, %s179
      %p183 = pneg %p177
      %p184 = scmp.eq.s32.totalorder %s21, 1
      %p185 = por %p183, %p184
      %p186 = scmp.ne.s32.totalorder %s178, %s181
      %p187 = scmp.eq.s32.totalorder %s21, 0
      %p188 = por %p186, %p187
      %p189 = scmp.ne.s32.totalorder %s178, %s181
      %p190 = scmp.eq.s32.totalorder %s26, 1
      %p191 = por %p189, %p190
      %p192 = scmp.ne.s32.totalorder %s181, %s182
      %p193 = scmp.eq.s32.totalorder %s26, 0
      %p194 = por %p192, %p193
      %p195 = scmp.ne.s32.totalorder %s181, %s182
      %p196 = scmp.eq.s32.totalorder %s27, 1
      %p197 = por %p195, %p196
      %p199 = scmp.ne.s32.totalorder %s182, %s198
      %p200 = scmp.eq.s32.totalorder %s27, 0
      %p201 = por %p199, %p200
      %s202 = ssub.s32 %s28, %s40
      %p203 = scmp.eq.s32.totalorder %s202, 0
      %s205 = sadd.s32 %s204, 1
      %s206 = scalar_select %p203, %s204, %s205
      %p209 = pneg %p203
      %p210 = scmp.eq.s32.totalorder %s21, 1
      %p211 = por %p209, %p210
      %p212 = scmp.ne.s32.totalorder %s204, %s207
      %p213 = scmp.eq.s32.totalorder %s21, 0
      %p214 = por %p212, %p213
      %p215 = scmp.ne.s32.totalorder %s204, %s207
      %p216 = scmp.eq.s32.totalorder %s26, 1
      %p217 = por %p215, %p216
      %p218 = scmp.ne.s32.totalorder %s207, %s208
      %p219 = scmp.eq.s32.totalorder %s26, 0
      %p220 = por %p218, %p219
      %p221 = scmp.ne.s32.totalorder %s207, %s208
      %p222 = scmp.eq.s32.totalorder %s27, 1
      %p223 = por %p221, %p222
      %p225 = scmp.ne.s32.totalorder %s208, %s224
      %p226 = scmp.eq.s32.totalorder %s27, 0
      %p227 = por %p225, %p226
      %p228 = scmp.le.s32.totalorder 1, %s21
      %p229 = scmp.lt.s32.totalorder %s21, 3
      %p230 = pnand %p228, %p229
      %p231 = pneg %p230
      // Predicated region
      $region9: #{tpu_custom_call.1} parent=5 // pred_check
        _
      $region10: #{tpu_custom_call.1} parent=5 // pred_check_branch
        %233 = sbr.rel (%p230) target = $region12
      $region11: #{tpu_custom_call.1} parent=5 // pred_region
        %s234 = ssub.s32 %s21, 1
        // Predicated region
        $region13: #{tpu_custom_call.1} parent=11 // pred_check
          %p235 = pneg %p82
        $region14: #{tpu_custom_call.1} parent=11 // pred_check_branch
          %237 = sbr.rel (%p235) target = $region16
        $region15: #{tpu_custom_call.1} parent=11 // pred_region
          _
        $region16: #{tpu_custom_call.1} parent=11 // pred_fallthru
          _
        // Predicated region
        $region17: #{tpu_custom_call.1} parent=11 // pred_check
          %p238 = pneg %p103
        $region18: #{tpu_custom_call.1} parent=11 // pred_check_branch
          %240 = sbr.rel (%p238) target = $region20
        $region19: #{tpu_custom_call.1} parent=11 // pred_region
          _
        $region20: #{tpu_custom_call.1} parent=11 // pred_fallthru
          _
        // Predicated region
        $region21: #{tpu_custom_call.1} parent=11 // pred_check
          %p241 = pneg %p124
        $region22: #{tpu_custom_call.1} parent=11 // pred_check_branch
          %243 = sbr.rel (%p241) target = $region24
        $region23: #{tpu_custom_call.1} parent=11 // pred_region
          _
        $region24: #{tpu_custom_call.1} parent=11 // pred_fallthru
          _
        // Predicated region
        $region25: #{tpu_custom_call.1} parent=11 // pred_check
          %p244 = pneg %p145
        $region26: #{tpu_custom_call.1} parent=11 // pred_check_branch
          %246 = sbr.rel (%p244) target = $region28
        $region27: #{tpu_custom_call.1} parent=11 // pred_region
          _
        $region28: #{tpu_custom_call.1} parent=11 // pred_fallthru
          _
        // Predicated region
        $region29: #{tpu_custom_call.1} parent=11 // pred_check
          %p247 = pneg %p166
        $region30: #{tpu_custom_call.1} parent=11 // pred_check_branch
          %249 = sbr.rel (%p247) target = $region32
        $region31: #{tpu_custom_call.1} parent=11 // pred_region
          %251 = vsyncadd [#allocation8], 0
          %s252 = sshll.u32 %s5, 4
          %s253 = int_to_ptr.hbm [resolvable:$true] %s252
          %s254 = sshll.u32 [#allocation7], 4
          %s255 = int_to_ptr.vmem [resolvable:$true] %s254
          %260 = dma.hbm_to_vmem [thread:$0]  %s253, 256, %s255, [#allocation8], 128, 128, 8
        $region32: #{tpu_custom_call.1} parent=11 // pred_fallthru
          _
      $region12: #{tpu_custom_call.1} parent=5 // pred_fallthru
        _
      %p261 = scmp.lt.s32.totalorder %s21, 2
      // Predicated region
      $region33: #{tpu_custom_call.1} parent=5 // pred_check
        %p262 = pneg %p261
      $region34: #{tpu_custom_call.1} parent=5 // pred_check_branch
        %264 = sbr.rel (%p262) target = $region36
      $region35: #{tpu_custom_call.1} parent=5 // pred_region
        // Predicated region
        $region37: #{tpu_custom_call.1} parent=35 // pred_check
          %p265 = pneg %p55
        $region38: #{tpu_custom_call.1} parent=35 // pred_check_branch
          %267 = sbr.rel (%p265) target = $region40
        $region39: #{tpu_custom_call.1} parent=35 // pred_region
          %s268 = sand.u32 %s45, 1
          %s269 = scalar_lea.sflag [#allocation5], %s268
          %s270 = sand.u32 %s45, 1
          %s271 = smul.addr %s270, 64
          %s272 = scalar_lea.vmem [#allocation4], %s271
          %s273 = smul.u32 2, %s29
          %275 = vsyncadd %s269, 0
          %s276 = smul.addr %s28, 8
          %s277 = sadd.s32 %s273, %s276
          %s278 = smul.addr %s277, 8
          %s279 = scalar_lea.hbm %s0, %s278
          %s280 = sshll.u32 %s279, 4
          %s281 = int_to_ptr.hbm [resolvable:$true] %s280
          %s282 = sshll.u32 %s272, 4
          %s283 = int_to_ptr.vmem [resolvable:$true] %s282
          %288 = dma.hbm_to_vmem [thread:$0]  %s281, 1024, %s283, %s269, 256, 256, 16
        $region40: #{tpu_custom_call.1} parent=35 // pred_fallthru
          _
      $region36: #{tpu_custom_call.1} parent=5 // pred_fallthru
        _
      %p289 = scmp.le.s32.totalorder 1, %s21
      %p290 = scmp.lt.s32.totalorder %s21, 3
      %p291 = pnand %p289, %p290
      %p292 = pneg %p291
      // Predicated region
      $region41: #{tpu_custom_call.1} parent=5 // pred_check
        _
      $region42: #{tpu_custom_call.1} parent=5 // pred_check_branch
        %294 = sbr.rel (%p291) target = $region44
      $region43: #{tpu_custom_call.1} parent=5 // pred_region
        %s295 = ssub.s32 %s21, 1
        %s296 = sand.u32 %s48, 1
        %s297 = scalar_lea.sflag [#allocation5], %s296
        %s298 = sand.u32 %s48, 1
        %s299 = smul.addr %s298, 64
        %s300 = scalar_lea.vmem [#allocation4], %s299
        // Predicated region
        $region45: #{tpu_custom_call.1} parent=43 // pred_check
          %p301 = pneg %p61
        $region46: #{tpu_custom_call.1} parent=43 // pred_check_branch
          %303 = sbr.rel (%p301) target = $region48
        $region47: #{tpu_custom_call.1} parent=43 // pred_region
          %305 = dma.done %s297, 1024
        $region48: #{tpu_custom_call.1} parent=43 // pred_fallthru
          _
        // Predicated region
        $region49: #{tpu_custom_call.1} parent=43 // pred_check
          %p306 = pneg %p166
        $region50: #{tpu_custom_call.1} parent=43 // pred_check_branch
          %308 = sbr.rel (%p306) target = $region52
        $region51: #{tpu_custom_call.1} parent=43 // pred_region
          %310 = dma.done [#allocation8], 256
        $region52: #{tpu_custom_call.1} parent=43 // pred_fallthru
          _
        %s311 = sand.u32 %s48, 1
        %s312 = scalar_lea.sflag [#allocation5], %s311
        %s313 = sand.u32 %s48, 1
        %s314 = smul.addr %s313, 64
        %s315 = scalar_lea.vmem [#allocation4], %s314
        %p316 = pneg %p61
        %p317 = pneg %p58
        %p318 = pneg %p82
        %p319 = pneg %p79
        %p320 = pneg %p103
        %p321 = pneg %p100
        %p322 = pneg %p124
        %p323 = pneg %p121
        %p324 = pneg %p145
        %p325 = pneg %p142
        %p326 = pneg %p166
        %p327 = pneg %p163
        %p328 = pneg %p194
        %p329 = pneg %p191
        %s330 = sand.u32 %s181, 1
        %s331 = scalar_lea.sflag [#allocation6], %s330
        %s332 = sand.u32 %s181, 1
        %s333 = smul.addr %s332, 4
        %s334 = scalar_lea.vmem [#allocation9], %s333
        %p335 = pneg %p220
        %p336 = pneg %p217
        %p337 = scmp.lt.s32.totalorder %s30, 1
        %s338 = scalar_select %p337, %s30, 1
        %s339 = smul.addr %s338, 2
        %s340 = smul.addr %s339, 8
        %s341 = scalar_lea.vmem %s7, %s340
        %s342 = smul.u32 2, %s31
        %s343 = smul.u32 2, %s31
        %p344 = scmp.lt.s32.totalorder %s30, 1
        %s345 = scalar_select %p344, %s30, 1
        %s346 = smul.addr %s345, 2
        %s347 = smul.addr %s346, 8
        %s348 = scalar_lea.vmem %s7, %s347
        %p349 = scmp.eq.s32.totalorder %s31, 0
        // Predicated region
        $region53: #{tpu_custom_call.1} parent=43 // pred_check
          %p350 = pneg %p349
        $region54: #{tpu_custom_call.1} parent=43 // pred_check_branch
          %352 = sbr.rel (%p350) target = $region56
        $region55: #{tpu_custom_call.1} parent=43 // pred_region
          %vm353 = vcmask 254976
          %354 = vst.msk [vmem:[#allocation2] sm:$0x3] %vm353, 0.0
          %vm355 = vcmask 1024
          %356 = vst.msk [vmem:[#allocation3] sm:$0x3] %vm355, 0.0
        $region56: #{tpu_custom_call.1} parent=43 // pred_fallthru
          _
        %v357 = vld [vmem:[%s300] sm:$0xff]
        %v358 = vld [vmem:[%s300 + $0x8] sm:$0xff]
        %v359 = vld [vmem:[%s300 + $0x10] sm:$0xff]
        %v360 = vld [vmem:[%s300 + $0x18] sm:$0xff]
        %v361 = vld [vmem:[%s300 + $0x20] sm:$0xff]
        %v362 = vld [vmem:[%s300 + $0x28] sm:$0xff]
        %v363 = vld [vmem:[%s300 + $0x30] sm:$0xff]
        %v364 = vld [vmem:[%s300 + $0x38] sm:$0xff]
        %v365 = vmul.f32 %v357, %v357
        %v366 = vmul.f32 %v358, %v358
        %v367 = vmul.f32 %v359, %v359
        %v368 = vmul.f32 %v360, %v360
        %v369 = vmul.f32 %v361, %v361
        %v370 = vmul.f32 %v362, %v362
        %v371 = vmul.f32 %v363, %v363
        %v372 = vmul.f32 %v364, %v364
        %v373 = vld [vmem:[%s1] sm:$0x3]
        %v374 = vld [vmem:[%s2] sm:$0x3]
        %376 = vset.pattern.permute.xlu0 0
        %377 = vperm.xlu0 %376, %v374
        %v378 = vpop.permute.xlu0 %377
        %vm380 = vcmask 523264
        %v382 = vsel %vm380, %v373, 0
        %384 = vmatpush.msra.mxu0 0.0
        %385 = vmatpush.msra.mxu0 0.0
        %386 = vmatpush.msra.mxu0 0.0
        %387 = vmatpush.msra.mxu0 0.0
        %388 = vmatpush.msra.mxu0 0.0
        %389 = vmatpush.msra.mxu0 0.0
        %390 = vmatpush.msra.mxu0 0.0
        %391 = vmatpush.msra.mxu0 0.0
        %392 = vmatpush.msra.mxu0 %v363
        %393 = vmatpush.msra.mxu0 %v361
        %394 = vmatpush.msra.mxu0 %v359
        %395 = vmatpush.msra.mxu0 %v357
        %396 = vmatpush.msra.mxu0 %v371
        %397 = vmatpush.msra.mxu0 %v369
        %398 = vmatpush.msra.mxu0 %v367
        %399 = vmatpush.msra.mxu0 %v365
        %400 = vmatmul.f32.gmra.mxu0 %v382
        %v401 = vpop.f32.mrf.mxu0
        %v402 = vadd.f32 %v378, %v401
        %403 = vdwg.mxu0
        %404 = vmatpush.msra.mxu0 0.0
        %405 = vmatpush.msra.mxu0 0.0
        %406 = vmatpush.msra.mxu0 0.0
        %407 = vmatpush.msra.mxu0 0.0
        %408 = vmatpush.msra.mxu0 0.0
        %409 = vmatpush.msra.mxu0 0.0
        %410 = vmatpush.msra.mxu0 0.0
        %411 = vmatpush.msra.mxu0 0.0
        %412 = vmatpush.msra.mxu0 %v364
        %413 = vmatpush.msra.mxu0 %v362
        %414 = vmatpush.msra.mxu0 %v360
        %415 = vmatpush.msra.mxu0 %v358
        %416 = vmatpush.msra.mxu0 %v372
        %417 = vmatpush.msra.mxu0 %v370
        %418 = vmatpush.msra.mxu0 %v368
        %419 = vmatpush.msra.mxu0 %v366
        %420 = vmatmul.f32.gmra.mxu0 %v382
        %v421 = vpop.f32.mrf.mxu0
        %v422 = vadd.f32 %v378, %v421
        %423 = vdwg.mxu0
        %vm424 = vcmask 1041408
        %v425 = vsel %vm424, %v402, -inf
        %v426 = vrot.slane %v425, 4
        %v427 = vmax.f32 %v425, %v426
        %v428 = vrot.slane %v427, 2
        %v429 = vmax.f32 %v427, %v428
        %v430 = vrot.slane %v429, 1
        %v431 = vmax.f32 %v429, %v430
        %v432 = vsel %vm424, %v422, -inf
        %v433 = vrot.slane %v432, 4
        %v434 = vmax.f32 %v432, %v433
        %v435 = vrot.slane %v434, 2
        %v436 = vmax.f32 %v434, %v435
        %v437 = vrot.slane %v436, 1
        %v438 = vmax.f32 %v436, %v437
        %v439 = vsub.f32 %v402, %v431
        %v440 = vsub.f32 %v422, %v438
        %v441 = vmul.f32 %v439, 1.442695
        %v442 = vpow.pop %v441
        %v443 = vmul.f32 %v440, 1.442695
        %v444 = vpow.pop %v443
        %v445 = vsel %vm424, %v442, 0.0
        %v446 = vrot.slane %v445, 4
        %v447 = vadd.f32 %v445, %v446
        %v448 = vrot.slane %v447, 2
        %v449 = vadd.f32 %v447, %v448
        %v450 = vrot.slane %v449, 1
        %v451 = vadd.f32 %v449, %v450
        %v452 = vsel %vm424, %v444, 0.0
        %v453 = vrot.slane %v452, 4
        %v454 = vadd.f32 %v452, %v453
        %v455 = vrot.slane %v454, 2
        %v456 = vadd.f32 %v454, %v455
        %v457 = vrot.slane %v456, 1
        %v458 = vadd.f32 %v456, %v457
        %v459 = vrcp.pop %v451
        %v460 = vrcp.pop %v458
        %v461 = vmul.f32 %v442, %v459
        %v462 = vmul.f32 %v444, %v460
        %v465 = vrot.slane %v462, 6
        %v466 = vsel %vm424, %v461, %v465
        %468 = vst [vmem:[%s334] sm:$0xf] %v466
        %v469 = vld [vmem:[#allocation3] sm:$0x3]
        %v470 = vsel %vm424, %v461, 0.0
        %v471 = vsel %vm424, %v462, 0.0
        %v472 = vadd.f32 %v470, %v471
        %473 = vadd.xlane.f32.xlu0 %v472
        %v474 = vpop.xlane.xlu0 %473
        %v475 = vadd.f32 %v469, %v474
        %vm476 = vcmask 1024
        %477 = vst.msk [vmem:[#allocation3] sm:$0x3] %vm476, %v475
        %v478 = vld [vmem:[#allocation2] sm:$0x3]
        %479 = vmatpush.xpose.msra.mxu0 0.0
        %480 = vmatpush.xpose.msra.mxu0 0.0
        %481 = vmatpush.xpose.msra.mxu0 0.0
        %482 = vmatpush.xpose.msra.mxu0 0.0
        %483 = vmatpush.xpose.msra.mxu0 0.0
        %484 = vmatpush.xpose.msra.mxu0 0.0
        %485 = vmatpush.xpose.msra.mxu0 0.0
        %486 = vmatpush.xpose.msra.mxu0 0.0
        %487 = vmatpush.xpose.msra.mxu0 0.0
        %488 = vmatpush.xpose.msra.mxu0 0.0
        %489 = vmatpush.xpose.msra.mxu0 0.0
        %490 = vmatpush.xpose.msra.mxu0 0.0
        %491 = vmatpush.xpose.msra.mxu0 %v363
        %492 = vmatpush.xpose.msra.mxu0 %v361
        %493 = vmatpush.xpose.msra.mxu0 %v359
        %494 = vmatpush.xpose.msra.mxu0 %v357
        %495 = vmatmul.f32.gmra.mxu0 %v461
        %v496 = vpop.f32.mrf.mxu0
        %v497 = vadd.f32 0.0, %v496
        %498 = vdwg.mxu0
        %499 = vmatpush.xpose.msra.mxu0 0.0
        %500 = vmatpush.xpose.msra.mxu0 0.0
        %501 = vmatpush.xpose.msra.mxu0 0.0
        %502 = vmatpush.xpose.msra.mxu0 0.0
        %503 = vmatpush.xpose.msra.mxu0 0.0
        %504 = vmatpush.xpose.msra.mxu0 0.0
        %505 = vmatpush.xpose.msra.mxu0 0.0
        %506 = vmatpush.xpose.msra.mxu0 0.0
        %507 = vmatpush.xpose.msra.mxu0 0.0
        %508 = vmatpush.xpose.msra.mxu0 0.0
        %509 = vmatpush.xpose.msra.mxu0 0.0
        %510 = vmatpush.xpose.msra.mxu0 0.0
        %511 = vmatpush.xpose.msra.mxu0 %v364
        %512 = vmatpush.xpose.msra.mxu0 %v362
        %513 = vmatpush.xpose.msra.mxu0 %v360
        %514 = vmatpush.xpose.msra.mxu0 %v358
        %515 = vmatmul.f32.gmra.mxu0 %v462
        %v516 = vpop.f32.mrf.mxu0
        %v517 = vadd.f32 %v497, %v516
        %518 = vdwg.mxu0
        %v519 = vadd.f32 %v478, %v517
        %vm520 = vcmask 254976
        %521 = vst.msk [vmem:[#allocation2] sm:$0x3] %vm520, %v519
        // Predicated region
        $region57: #{tpu_custom_call.1} parent=43 // pred_check
          %p522 = pneg %p349
        $region58: #{tpu_custom_call.1} parent=43 // pred_check_branch
          %524 = sbr.rel (%p522) target = $region60
        $region59: #{tpu_custom_call.1} parent=43 // pred_region
          %v525 = vld [vmem:[#allocation3] sm:$0x3]
          %v526 = vld [vmem:[#allocation2] sm:$0x3]
          %v527 = vld [vmem:[%s3] sm:$0x3]
          %529 = vset.pattern.permute.xlu0 0
          %530 = vperm.xlu0 %529, %v525
          %v531 = vpop.permute.xlu0 %530
          %v533 = vmul.f32 %v527, %v531
          %v534 = vsub.f32 %v526, %v533
          %v535 = vadd.f32 %v525, 1e-06
          %v536 = vrcp.pop %v535
          %538 = vset.pattern.permute.xlu0 0
          %539 = vperm.xlu0 %538, %v536
          %v540 = vpop.permute.xlu0 %539
          %v542 = vmul.f32 %v534, %v540
          %v543 = vld [vmem:[%s4] sm:$0x3]
          %v544 = vmul.f32 %v542, %v543
          %v545 = vmul.f32 %v544, %v544
          %v546 = vsel %vm520, %v545, 0.0
          %547 = vadd.xlane.f32.xlu0 %v546
          %v548 = vpop.xlane.xlu0 %547
          %v549 = vadd.f32 %v548, 1e-06
          %v550 = vrsqrt.pop %v549
          %v551 = vmul.f32 %v550, %v549
          %v552 = vmul.f32 %v551, %v550
          %v553 = vmul.f32 0.5, %v552
          %v554 = vsub.f32 1.5, %v553
          %v555 = vmul.f32 %v550, %v554
          %vm556 = vweird.f32 %v549
          %vm557 = vweird.f32 %v550
          %vm558 = vmor %vm556, %vm557
          %v559 = vsel %vm558, %v550, %v555
          %v560 = vmul.f32 %v544, %v559
          %vm561 = vcmask 261120
          %v563 = vsel %vm561, %v560, 0
          %565 = vmatpush.xpose.msra.mxu0 0.0
          %566 = vmatpush.xpose.msra.mxu0 0.0
          %567 = vmatpush.xpose.msra.mxu0 0.0
          %568 = vmatpush.xpose.msra.mxu0 0.0
          %569 = vmatpush.xpose.msra.mxu0 0.0
          %570 = vmatpush.xpose.msra.mxu0 0.0
          %571 = vmatpush.xpose.msra.mxu0 0.0
          %572 = vmatpush.xpose.msra.mxu0 0.0
          %573 = vmatpush.xpose.msra.mxu0 0.0
          %574 = vmatpush.xpose.msra.mxu0 0.0
          %575 = vmatpush.xpose.msra.mxu0 0.0
          %576 = vmatpush.xpose.msra.mxu0 0.0
          %577 = vmatpush.xpose.msra.mxu0 0.0
          %578 = vmatpush.xpose.msra.mxu0 0.0
          %579 = vmatpush.xpose.msra.mxu0 0.0
          %580 = vmatpush.xpose.msra.mxu0 %v563
          %581 = vmatmul.f32.gmra.mxu0 %v563
          %v582 = vpop.f32.mrf.mxu0
          %v583 = vadd.f32 0.0, %v582
          %584 = vdwg.mxu0
          %v585 = vld [vmem:[#allocation7] sm:$0xff]
          %v586 = vld [vmem:[#allocation7 + $0x8] sm:$0xff]
          %v588 = vsel %vm561, %v585, 0
          %v591 = vsel %vm561, %v586, 0
          %593 = vmatpush.xpose.msra.mxu0 0.0
          %594 = vmatpush.xpose.msra.mxu0 0.0
          %595 = vmatpush.xpose.msra.mxu0 0.0
          %596 = vmatpush.xpose.msra.mxu0 0.0
          %597 = vmatpush.xpose.msra.mxu0 0.0
          %598 = vmatpush.xpose.msra.mxu0 0.0
          %599 = vmatpush.xpose.msra.mxu0 0.0
          %600 = vmatpush.xpose.msra.mxu0 0.0
          %601 = vmatpush.xpose.msra.mxu0 0.0
          %602 = vmatpush.xpose.msra.mxu0 0.0
          %603 = vmatpush.xpose.msra.mxu0 0.0
          %604 = vmatpush.xpose.msra.mxu0 0.0
          %605 = vmatpush.xpose.msra.mxu0 0.0
          %606 = vmatpush.xpose.msra.mxu0 0.0
          %607 = vmatpush.xpose.msra.mxu0 0.0
          %608 = vmatpush.xpose.msra.mxu0 %v563
          %609 = vmatmul.f32.gmra.mxu0 %v588
          %v610 = vpop.f32.mrf.mxu0
          %v611 = vadd.f32 0.0, %v610
          %612 = vmatmul.f32.gmra.mxu0 %v591
          %v613 = vpop.f32.mrf.mxu0
          %v614 = vadd.f32 0.0, %v613
          %615 = vdwg.mxu0
          %617 = vset.pattern.permute.xlu0 0
          %618 = vperm.xlu0 %617, %v611
          %v619 = vpop.permute.xlu0 %618
          %622 = vset.pattern.permute.xlu0 0
          %623 = vperm.xlu0 %622, %v614
          %v624 = vpop.permute.xlu0 %623
          %v626 = vperm.slane %v583, 0
          %v627 = vmul.f32 %v619, %v626
          %v628 = vmul.f32 %v624, %v626
          %629 = vset.pattern.permute.xlu0 1
          %630 = vperm.xlu0 %629, %v611
          %v631 = vpop.permute.xlu0 %630
          %633 = vset.pattern.permute.xlu0 1
          %634 = vperm.xlu0 %633, %v614
          %v635 = vpop.permute.xlu0 %634
          %v637 = vperm.slane %v583, 1
          %v638 = vmul.f32 %v631, %v637
          %v639 = vmul.f32 %v635, %v637
          %v640 = vadd.f32 %v627, %v638
          %v641 = vadd.f32 %v628, %v639
          %v642 = vmax.f32 %v640, 0.0
          %v643 = vmax.f32 %v641, 0.0
          %vm644 = vcmask 15360
          %645 = vst.msk [vmem:[%s348] sm:$0xff] %vm644, %v642
          %646 = vst.msk [vmem:[%s348 + $0x8] sm:$0xff] %vm644, %v643
        $region60: #{tpu_custom_call.1} parent=43 // pred_fallthru
          _
        %s647 = sand.u32 %s181, 1
        %s648 = scalar_lea.sflag [#allocation6], %s647
        %s649 = sand.u32 %s181, 1
        %s650 = smul.addr %s649, 4
        %s651 = scalar_lea.vmem [#allocation9], %s650
        %p652 = scmp.lt.s32.totalorder %s30, 1
        %s653 = scalar_select %p652, %s30, 1
        %s654 = smul.addr %s653, 2
        %s655 = smul.addr %s654, 8
        %s656 = scalar_lea.vmem %s7, %s655
        // Predicated region
        $region61: #{tpu_custom_call.1} parent=43 // pred_check
          %p657 = pneg %p191
        $region62: #{tpu_custom_call.1} parent=43 // pred_check_branch
          %659 = sbr.rel (%p657) target = $region64
        $region63: #{tpu_custom_call.1} parent=43 // pred_region
          %s660 = smul.u32 2, %s31
          %662 = vsyncadd %s648, 0
          %s663 = smul.addr %s30, 2
          %s664 = sadd.s32 %s660, %s663
          %s665 = smul.addr %s664, 2
          %s666 = scalar_lea.hbm %s6, %s665
          %s668 = sshll.u32 %s651, 4
          %s669 = int_to_ptr.vmem [resolvable:$true] %s668
          %s670 = sshll.u32 %s666, 4
          %s671 = int_to_ptr.hbm [resolvable:$true] %s670
          %673 = dma.vmem_to_hbm [thread:$0]  %s669, 64, %s671, %s648
        $region64: #{tpu_custom_call.1} parent=43 // pred_fallthru
          _
        // Predicated region
        $region65: #{tpu_custom_call.1} parent=43 // pred_check
          %p674 = pneg %p217
        $region66: #{tpu_custom_call.1} parent=43 // pred_check_branch
          %676 = sbr.rel (%p674) target = $region68
        $region67: #{tpu_custom_call.1} parent=43 // pred_region
          _
        $region68: #{tpu_custom_call.1} parent=43 // pred_fallthru
          _
      $region44: #{tpu_custom_call.1} parent=5 // pred_fallthru
        _
      %p677 = scmp.le.s32.totalorder 2, %s21
      // Predicated region
      $region69: #{tpu_custom_call.1} parent=5 // pred_check
        %p678 = pneg %p677
      $region70: #{tpu_custom_call.1} parent=5 // pred_check_branch
        %680 = sbr.rel (%p678) target = $region72
      $region71: #{tpu_custom_call.1} parent=5 // pred_region
        %s681 = ssub.s32 %s21, 2
        // Predicated region
        $region73: #{tpu_custom_call.1} parent=71 // pred_check
          %p682 = pneg %p197
        $region74: #{tpu_custom_call.1} parent=71 // pred_check_branch
          %684 = sbr.rel (%p682) target = $region76
        $region75: #{tpu_custom_call.1} parent=71 // pred_region
          %s685 = sand.u32 %s182, 1
          %s686 = scalar_lea.sflag [#allocation6], %s685
          %s687 = sand.u32 %s182, 1
          %s688 = smul.addr %s687, 4
          %s689 = scalar_lea.vmem [#allocation9], %s688
          %691 = dma.done %s686, 64
        $region76: #{tpu_custom_call.1} parent=71 // pred_fallthru
          _
        // Predicated region
        $region77: #{tpu_custom_call.1} parent=71 // pred_check
          %p692 = pneg %p223
        $region78: #{tpu_custom_call.1} parent=71 // pred_check_branch
          %694 = sbr.rel (%p692) target = $region80
        $region79: #{tpu_custom_call.1} parent=71 // pred_region
          %p695 = scmp.lt.s32.totalorder %s32, 1
          %s696 = scalar_select %p695, %s32, 1
          %s697 = smul.addr %s696, 2
          %s698 = smul.addr %s697, 8
          %s699 = scalar_lea.vmem %s7, %s698
        $region80: #{tpu_custom_call.1} parent=71 // pred_fallthru
          _
      $region72: #{tpu_custom_call.1} parent=5 // pred_fallthru
        _
    $region6: #{tpu_custom_call.1} parent=1 // loop_footer
      %s25 = sadd.s32 1, %s21
    $region7: #{tpu_custom_call.1} parent=1 // loop_footer_branch
      %20 = sbr.rel target = $region3
    $region8: #{tpu_custom_call.1} parent=1 // loop_exit
      _
    %700 = vsyncpa [#allocation5], 1
    %s701 = scalar_lea.sflag [#allocation5], 1
    %702 = vsyncpa %s701, 1
    %703 = vsyncpa [#allocation8], 1
    %704 = vsyncpa [#allocation6], 1
    %s705 = scalar_lea.sflag [#allocation6], 1
    %706 = vsyncpa %s705, 1

</llo_original>
